<compile_context>
chip_gen: v7x
topology: tpu7x:2x2x1
jax: 0.10.0
libtpu: 0.0.40
codegen_flags: <defaults>
</compile_context>

<pallas_src>
import functools
import math

import jax
import jax.numpy as jnp
from jax.experimental import pallas as pl
from jax.experimental.pallas import tpu as pltpu

_BIG = 1e30  # sentinel so padded / invalid samples contribute exactly 0 hinge


# --------------------------------------------------------------------------
# Kernel 1: per-voxel pass (softmax, confidence, correctness, dice sums)
# --------------------------------------------------------------------------
def _dice_rank_fwd_kernel(lg_ref, lb_ref,
                          maxp_ref, corr_ref, inter_ref, psum_ref, tsum_ref,
                          inter_acc, psum_acc, tsum_acc):
    s = pl.program_id(1)

    @pl.when(s == 0)
    def _():
        inter_acc[...] = jnp.zeros_like(inter_acc)
        psum_acc[...] = jnp.zeros_like(psum_acc)
        tsum_acc[...] = jnp.zeros_like(tsum_acc)

    lg = lg_ref[...].astype(jnp.float32)          # (B, C, ts), C on sublanes
    lb = lb_ref[...]                              # (B, ts) int32 labels

    # softmax over the (small) channel / sublane axis
    m = jnp.max(lg, axis=1, keepdims=True)        # (B, 1, ts)
    e = jnp.exp(lg - m)                           # (B, C, ts)
    z = jnp.sum(e, axis=1, keepdims=True)         # (B, 1, ts)
    probs = e / z                                 # (B, C, ts)

    # one-hot targets rebuilt in-register from integer labels (no HBM one-hot)
    cls = jax.lax.broadcasted_iota(jnp.int32, lg.shape, 1)
    onehot = (cls == lb[:, None, :]).astype(jnp.float32)

    # per-voxel outputs for the ranking loss (lane-dense (B, ts) stores)
    maxp_ref[...] = jnp.max(probs, axis=1).astype(maxp_ref.dtype)
    lg_at_label = jnp.sum(lg * onehot, axis=1)                       # (B, ts)
    corr_ref[...] = (lg_at_label >= m[:, 0, :]).astype(corr_ref.dtype)

    # lane-resident dice partial sums -> plain vector adds in the hot loop
    inter_acc[...] += probs * onehot
    psum_acc[...] += probs
    tsum_acc[...] += onehot

    @pl.when(s == pl.num_programs(1) - 1)
    def _():
        # cross-lane reduce only once per spatial chunk
        inter_ref[...] = jnp.sum(inter_acc[...], axis=-1)[None]      # (1, B, C)
        psum_ref[...] = jnp.sum(psum_acc[...], axis=-1)[None]
        tsum_ref[...] = jnp.sum(tsum_acc[...], axis=-1)[None]


# --------------------------------------------------------------------------
# Kernel 2: sum over all (correct, wrong) pairs of relu(wrong - correct + m)
# --------------------------------------------------------------------------
def _pair_hinge_kernel(c_ref, w_ref, out_ref, acc_ref, *, margin):
    i = pl.program_id(0)

    @pl.when(i == 0)
    def _():
        acc_ref[...] = jnp.zeros_like(acc_ref)

    c = c_ref[...]                                 # (tc, 1)  correct scores
    w = w_ref[...]                                 # (1, Kw)  wrong scores
    hinge = jnp.maximum(w - c + margin, 0.0)       # (tc, Kw) broadcasted
    acc_ref[...] += jnp.sum(hinge, axis=0, keepdims=True)   # lane-resident

    @pl.when(i == pl.num_programs(0) - 1)
    def _():
        out_ref[...] = jnp.sum(acc_ref[...]).reshape(1, 1)


# --------------------------------------------------------------------------
# Wrappers
# --------------------------------------------------------------------------
def _round_up(x, m):
    return (x + m - 1) // m * m


def _pick_spatial_tiling(S, max_tile):
    """Largest multiple-of-128 tile dividing S (<= max_tile); 2 parallel chunks
    (v7x megacore) whenever the step count is even."""
    ts = None
    cap = min(max_tile, S)
    cap -= cap % 128
    for cand in range(cap, 0, -128):
        if S % cand == 0:
            ts = cand
            break
    if ts is None:
        ts = S                      # single full-extent block (always legal)
    nsteps = S // ts
    nchunks = 2 if nsteps % 2 == 0 else 1
    return ts, nsteps // nchunks, nchunks


def _per_voxel_pass(logits, labels, max_spatial_tile):
    """Returns (max_probs (B,S), correct (B,S), inter (B,C), psum (B,C), tsum (B,C))."""
    B, C, S = logits.shape
    ts, spc, nchunks = _pick_spatial_tiling(S, max_spatial_tile)

    # rough VMEM budget (double-buffered tiles + scratch), capped for v7x
    est = (2 * (B * C * ts + B * ts) + 2 * 2 * B * ts + 3 * B * C * ts) * 4
    vmem_limit = int(min(max(4 * est, 16 * 1024 * 1024), 40 * 1024 * 1024))

    maxp, corr, inter, psum, tsum = pl.pallas_call(
        _dice_rank_fwd_kernel,
        out_shape=(
            jax.ShapeDtypeStruct((B, S), jnp.float32),
            jax.ShapeDtypeStruct((B, S), jnp.float32),
            jax.ShapeDtypeStruct((nchunks, B, C), jnp.float32),
            jax.ShapeDtypeStruct((nchunks, B, C), jnp.float32),
            jax.ShapeDtypeStruct((nchunks, B, C), jnp.float32),
        ),
        grid_spec=pltpu.PrefetchScalarGridSpec(
            num_scalar_prefetch=0,
            grid=(nchunks, spc),
            in_specs=[
                pl.BlockSpec((B, C, ts), lambda p, s: (0, 0, p * spc + s)),
                pl.BlockSpec((B, ts), lambda p, s: (0, p * spc + s)),
            ],
            out_specs=[
                pl.BlockSpec((B, ts), lambda p, s: (0, p * spc + s)),
                pl.BlockSpec((B, ts), lambda p, s: (0, p * spc + s)),
                pl.BlockSpec((1, B, C), lambda p, s: (p, 0, 0)),
                pl.BlockSpec((1, B, C), lambda p, s: (p, 0, 0)),
                pl.BlockSpec((1, B, C), lambda p, s: (p, 0, 0)),
            ],
            scratch_shapes=[
                pltpu.VMEM((B, C, ts), jnp.float32),
                pltpu.VMEM((B, C, ts), jnp.float32),
                pltpu.VMEM((B, C, ts), jnp.float32),
            ],
        ),
        compiler_params=pltpu.CompilerParams(
            dimension_semantics=("parallel", "arbitrary"),
            vmem_limit_bytes=vmem_limit),
    )(logits, labels)

    return maxp, corr, inter.sum(0), psum.sum(0), tsum.sum(0)


def _pair_hinge_sum(c_scores, w_scores, margin):
    """Sum over all pairs of relu(w_j - c_i + margin) via a small Pallas kernel."""
    Kc, Kw = c_scores.shape[0], w_scores.shape[0]
    tc = min(512, _round_up(Kc, 8))
    Kc_pad = _round_up(Kc, tc)
    Kw_pad = _round_up(Kw, 128)
    c = jnp.pad(c_scores, (0, Kc_pad - Kc), constant_values=_BIG).reshape(Kc_pad, 1)
    w = jnp.pad(w_scores, (0, Kw_pad - Kw), constant_values=-_BIG).reshape(1, Kw_pad)

    out = pl.pallas_call(
        functools.partial(_pair_hinge_kernel, margin=float(margin)),
        out_shape=jax.ShapeDtypeStruct((1, 1), jnp.float32),
        grid_spec=pltpu.PrefetchScalarGridSpec(
            num_scalar_prefetch=0,
            grid=(Kc_pad // tc,),
            in_specs=[
                pl.BlockSpec((tc, 1), lambda i: (i, 0)),
                pl.BlockSpec((1, Kw_pad), lambda i: (0, 0)),
            ],
            out_specs=pl.BlockSpec((1, 1), lambda i: (0, 0)),
            scratch_shapes=[pltpu.VMEM((1, Kw_pad), jnp.float32)],
        ),
        compiler_params=pltpu.CompilerParams(
            dimension_semantics=("arbitrary",)),
    )(c, w)
    return out[0, 0]


def ranking_dice_loss(outputs, targets, key, *, alpha=1.0, lamda=1.0,
                      smooth=1.0, num_sample_correct=6600,
                      num_sample_wrong=300, margin=0.1,
                      max_spatial_tile=2048):
    """RankingDiceLoss.forward.  outputs/targets: (B, C, *spatial) channels-first
    (like the PyTorch module); targets are one-hot.  `lamda` is stored but unused
    by the PyTorch module, kept only for signature parity."""
    del lamda
    B, C = outputs.shape[0], outputs.shape[1]
    S = math.prod(outputs.shape[2:])
    logits = outputs.reshape(B, C, S).astype(jnp.float32)
    labels = jnp.argmax(targets.reshape(B, C, S), axis=1).astype(jnp.int32)

    maxp, corr, inter, psum, tsum = _per_voxel_pass(logits, labels,
                                                    max_spatial_tile)

    # ---- dice term: 1 - mean_{b,c} (2*I + smooth) / (P + T + smooth) ----
    dice = (2.0 * inter + smooth) / (psum + tsum + smooth)
    dice_loss = 1.0 - jnp.mean(dice)

    # ---- ranking term: margin ranking loss on sampled confidence scores ----
    N = B * S
    conf = maxp.reshape(N)
    correct = corr.reshape(N) > 0.5
    kc = min(num_sample_correct, N)
    kw = min(num_sample_wrong, N)

    # TODO(synk): torch.randperm-style subsampling with a data-dependent count
    # has no clean Pallas equivalent; uniform without-replacement sampling via
    # random priorities + top_k runs in plain JAX here.
    key_c, key_w = jax.random.split(key)
    pri_c = jnp.where(correct, jax.random.uniform(key_c, (N,)), -1.0)
    pri_w = jnp.where(correct, -1.0, jax.random.uniform(key_w, (N,)))
    val_c, idx_c = jax.lax.top_k(pri_c, kc)
    val_w, idx_w = jax.lax.top_k(pri_w, kw)
    ok_c = val_c >= 0.0
    ok_w = val_w >= 0.0
    c_scores = jnp.where(ok_c, conf[idx_c], _BIG)    # invalid rows -> hinge 0
    w_scores = jnp.where(ok_w, conf[idx_w], -_BIG)   # invalid cols -> hinge 0

    hinge_sum = _pair_hinge_sum(c_scores, w_scores, margin)
    n_pairs = ok_c.sum().astype(jnp.float32) * ok_w.sum().astype(jnp.float32)
    # PyTorch returns 0 when there are no correct voxels; we also return 0 when
    # there are no wrong voxels (PyTorch would produce a NaN mean-of-empty).
    rank_loss = jnp.where(n_pairs > 0, hinge_sum / jnp.maximum(n_pairs, 1.0), 0.0)

    return dice_loss + alpha * rank_loss


# --------------------------------------------------------------------------
# Pure-JAX reference (mirrors the PyTorch forward, same sampling scheme)
# --------------------------------------------------------------------------
def ranking_dice_loss_ref(outputs, targets, key, *, alpha=1.0, smooth=1.0,
                          num_sample_correct=6600, num_sample_wrong=300,
                          margin=0.1):
    lg = jnp.moveaxis(outputs, 1, -1)                  # channels-last
    tg = jnp.moveaxis(targets, 1, -1)
    probs = jax.nn.softmax(lg, axis=-1)
    red = tuple(range(1, tg.ndim - 1))
    inter = jnp.sum(probs * tg, axis=red)
    dice = (2.0 * inter + smooth) / (jnp.sum(probs, axis=red)
                                     + jnp.sum(tg, axis=red) + smooth)
    dice_loss = 1.0 - jnp.mean(dice)

    conf = jnp.max(probs, axis=-1).reshape(-1)
    correct = (jnp.argmax(lg, axis=-1) == jnp.argmax(tg, axis=-1)).reshape(-1)
    N = conf.shape[0]
    kc = min(num_sample_correct, N)
    kw = min(num_sample_wrong, N)
    key_c, key_w = jax.random.split(key)
    pri_c = jnp.where(correct, jax.random.uniform(key_c, (N,)), -1.0)
    pri_w = jnp.where(correct, -1.0, jax.random.uniform(key_w, (N,)))
    val_c, idx_c = jax.lax.top_k(pri_c, kc)
    val_w, idx_w = jax.lax.top_k(pri_w, kw)
    ok_c = (val_c >= 0.0).astype(jnp.float32)
    ok_w = (val_w >= 0.0).astype(jnp.float32)
    hinge = jnp.maximum(conf[idx_w][None, :] - conf[idx_c][:, None] + margin, 0.0)
    wmat = ok_c[:, None] * ok_w[None, :]
    n_pairs = jnp.sum(wmat)
    rank_loss = jnp.where(n_pairs > 0,
                          jnp.sum(hinge * wmat) / jnp.maximum(n_pairs, 1.0), 0.0)
    return dice_loss + alpha * rank_loss


if __name__ == "__main__":
    B, C, H, W = 2, 4, 32, 16
    alpha = 1.0

    root = jax.random.PRNGKey(0)
    k_logits, k_labels, k_sample = jax.random.split(root, 3)

    outputs = jax.random.normal(k_logits, (B, C, H, W), dtype=jnp.float32)
    labels = jax.random.randint(k_labels, (B, H, W), 0, C)
    targets = jnp.moveaxis(jax.nn.one_hot(labels, C, dtype=jnp.float32), -1, 1)

    # small tile so these toy shapes still exercise the multi-chunk ("parallel")
    # axis and the multi-step accumulation path of the kernel
    loss = ranking_dice_loss(outputs, targets, k_sample, alpha=alpha,
                             max_spatial_tile=128)
    loss = jax.block_until_ready(loss)

    loss_ref = ranking_dice_loss_ref(outputs, targets, k_sample, alpha=alpha)

    assert jnp.allclose(loss, loss_ref, atol=5e-5, rtol=5e-5), (loss, loss_ref)
    print("KERNEL_OK")
</pallas_src>

<mosaic_0001>
module attributes {stable_mosaic.version = 11 : i64} {
  func.func @_dice_rank_fwd_kernel(%arg0: i32, %arg1: i32, %arg2: memref<2x4x128xf32, #tpu.memory_space<vmem>>, %arg3: memref<2x128xi32, #tpu.memory_space<vmem>>, %arg4: memref<2x128xf32, #tpu.memory_space<vmem>>, %arg5: memref<2x128xf32, #tpu.memory_space<vmem>>, %arg6: memref<1x2x4xf32, #tpu.memory_space<vmem>>, %arg7: memref<1x2x4xf32, #tpu.memory_space<vmem>>, %arg8: memref<1x2x4xf32, #tpu.memory_space<vmem>>, %arg9: memref<2x4x128xf32, #tpu.memory_space<vmem>>, %arg10: memref<2x4x128xf32, #tpu.memory_space<vmem>>, %arg11: memref<2x4x128xf32, #tpu.memory_space<vmem>>) attributes {dimension_semantics = [#tpu.dimension_semantics<parallel>, #tpu.dimension_semantics<arbitrary>], iteration_bounds = array<i64: 2, 2>, scalar_prefetch = 0 : i64, scratch_operands = 3 : i64, tpu.core_type = #tpu.core_type<tc>, window_params = [{transform_indices = @transform_0, window_bounds = array<i64: 2, 4, 128>}, {transform_indices = @transform_1, window_bounds = array<i64: 2, 128>}, {transform_indices = @transform_2, window_bounds = array<i64: 2, 128>}, {transform_indices = @transform_3, window_bounds = array<i64: 2, 128>}, {transform_indices = @transform_4, window_bounds = array<i64: 1, 2, 4>}, {transform_indices = @transform_5, window_bounds = array<i64: 1, 2, 4>}, {transform_indices = @transform_6, window_bounds = array<i64: 1, 2, 4>}]} {
    %c0_i32 = arith.constant 0 : i32
    %0 = arith.cmpi eq, %arg1, %c0_i32 : i32
    %1 = arith.extui %0 : i1 to i32
    %c0_i32_0 = arith.constant 0 : i32
    %2 = arith.cmpi ne, %1, %c0_i32_0 : i32
    scf.if %2 {
      %cst_31 = arith.constant 0.000000e+00 : f32
      %42 = vector.broadcast %cst_31 : f32 to vector<2x4x128xf32>
      %c0_32 = arith.constant 0 : index
      %c0_33 = arith.constant 0 : index
      %c0_34 = arith.constant 0 : index
      %43 = vector.load %arg9[%c0_32, %c0_33, %c0_34] : memref<2x4x128xf32, #tpu.memory_space<vmem>>, vector<2x4x128xf32>
      tpu.vector_store %arg9[%c0_32, %c0_33, %c0_34], %42 {strides = array<i32>} : memref<2x4x128xf32, #tpu.memory_space<vmem>>, vector<2x4x128xf32>,
      %cst_35 = arith.constant 0.000000e+00 : f32
      %44 = vector.broadcast %cst_35 : f32 to vector<2x4x128xf32>
      %c0_36 = arith.constant 0 : index
      %c0_37 = arith.constant 0 : index
      %c0_38 = arith.constant 0 : index
      %45 = vector.load %arg10[%c0_36, %c0_37, %c0_38] : memref<2x4x128xf32, #tpu.memory_space<vmem>>, vector<2x4x128xf32>
      tpu.vector_store %arg10[%c0_36, %c0_37, %c0_38], %44 {strides = array<i32>} : memref<2x4x128xf32, #tpu.memory_space<vmem>>, vector<2x4x128xf32>,
      %cst_39 = arith.constant 0.000000e+00 : f32
      %46 = vector.broadcast %cst_39 : f32 to vector<2x4x128xf32>
      %c0_40 = arith.constant 0 : index
      %c0_41 = arith.constant 0 : index
      %c0_42 = arith.constant 0 : index
      %47 = vector.load %arg11[%c0_40, %c0_41, %c0_42] : memref<2x4x128xf32, #tpu.memory_space<vmem>>, vector<2x4x128xf32>
      tpu.vector_store %arg11[%c0_40, %c0_41, %c0_42], %46 {strides = array<i32>} : memref<2x4x128xf32, #tpu.memory_space<vmem>>, vector<2x4x128xf32>,
    } else {
    }
    %c0 = arith.constant 0 : index
    %c0_1 = arith.constant 0 : index
    %c0_2 = arith.constant 0 : index
    %3 = vector.load %arg2[%c0, %c0_1, %c0_2] : memref<2x4x128xf32, #tpu.memory_space<vmem>>, vector<2x4x128xf32>
    %c0_3 = arith.constant 0 : index
    %c0_4 = arith.constant 0 : index
    %4 = vector.load %arg3[%c0_3, %c0_4] : memref<2x128xi32, #tpu.memory_space<vmem>>, vector<2x128xi32>
    %cst = arith.constant dense<0xFF800000> : vector<2x128xf32>
    %5 = vector.multi_reduction <maximumf>, %3, %cst [1] : vector<2x4x128xf32> to vector<2x128xf32>
    %6 = vector.shape_cast %5 : vector<2x128xf32> to vector<2x1x128xf32>
    %7 = vector.broadcast %6 : vector<2x1x128xf32> to vector<2x4x128xf32>
    %8 = arith.subf %3, %7 : vector<2x4x128xf32>
    %9 = math.exp %8 : vector<2x4x128xf32>
    %cst_5 = arith.constant dense<0.000000e+00> : vector<2x128xf32>
    %10 = vector.multi_reduction <add>, %9, %cst_5 [1] : vector<2x4x128xf32> to vector<2x128xf32>
    %11 = vector.shape_cast %10 : vector<2x128xf32> to vector<2x1x128xf32>
    %12 = vector.broadcast %11 : vector<2x1x128xf32> to vector<2x4x128xf32>
    %13 = arith.divf %9, %12 : vector<2x4x128xf32>
    %14 = tpu.iota {dimensions = array<i32: 1>} : vector<2x4x128xi32>
    %15 = vector.shape_cast %4 : vector<2x128xi32> to vector<2x1x128xi32>
    %16 = vector.broadcast %15 : vector<2x1x128xi32> to vector<2x4x128xi32>
    %17 = arith.cmpi eq, %14, %16 : vector<2x4x128xi32>
    %18 = arith.extui %17 : vector<2x4x128xi1> to vector<2x4x128xi32>
    %19 = arith.sitofp %18 : vector<2x4x128xi32> to vector<2x4x128xf32>
    %cst_6 = arith.constant dense<0xFF800000> : vector<2x128xf32>
    %20 = vector.multi_reduction <maximumf>, %13, %cst_6 [1] : vector<2x4x128xf32> to vector<2x128xf32>
    %c0_7 = arith.constant 0 : index
    %c0_8 = arith.constant 0 : index
    %21 = vector.load %arg4[%c0_7, %c0_8] : memref<2x128xf32, #tpu.memory_space<vmem>>, vector<2x128xf32>
    tpu.vector_store %arg4[%c0_7, %c0_8], %20 {strides = array<i32>} : memref<2x128xf32, #tpu.memory_space<vmem>>, vector<2x128xf32>,
    %22 = arith.mulf %3, %19 : vector<2x4x128xf32>
    %cst_9 = arith.constant dense<0.000000e+00> : vector<2x128xf32>
    %23 = vector.multi_reduction <add>, %22, %cst_9 [1] : vector<2x4x128xf32> to vector<2x128xf32>
    %24 = vector.shape_cast %6 : vector<2x1x128xf32> to vector<2x128xf32>
    %25 = arith.cmpf oge, %23, %24 : vector<2x128xf32>
    %26 = arith.extui %25 : vector<2x128xi1> to vector<2x128xi32>
    %27 = arith.sitofp %26 : vector<2x128xi32> to vector<2x128xf32>
    %c0_10 = arith.constant 0 : index
    %c0_11 = arith.constant 0 : index
    %28 = vector.load %arg5[%c0_10, %c0_11] : memref<2x128xf32, #tpu.memory_space<vmem>>, vector<2x128xf32>
    tpu.vector_store %arg5[%c0_10, %c0_11], %27 {strides = array<i32>} : memref<2x128xf32, #tpu.memory_space<vmem>>, vector<2x128xf32>,
    %c0_12 = arith.constant 0 : index
    %c0_13 = arith.constant 0 : index
    %c0_14 = arith.constant 0 : index
    %29 = vector.load %arg9[%c0_12, %c0_13, %c0_14] : memref<2x4x128xf32, #tpu.memory_space<vmem>>, vector<2x4x128xf32>
    %30 = arith.mulf %13, %19 : vector<2x4x128xf32>
    %31 = arith.addf %29, %30 : vector<2x4x128xf32>
    %c0_15 = arith.constant 0 : index
    %c0_16 = arith.constant 0 : index
    %c0_17 = arith.constant 0 : index
    %32 = vector.load %arg9[%c0_15, %c0_16, %c0_17] : memref<2x4x128xf32, #tpu.memory_space<vmem>>, vector<2x4x128xf32>
    tpu.vector_store %arg9[%c0_15, %c0_16, %c0_17], %31 {strides = array<i32>} : memref<2x4x128xf32, #tpu.memory_space<vmem>>, vector<2x4x128xf32>,
    %c0_18 = arith.constant 0 : index
    %c0_19 = arith.constant 0 : index
    %c0_20 = arith.constant 0 : index
    %33 = vector.load %arg10[%c0_18, %c0_19, %c0_20] : memref<2x4x128xf32, #tpu.memory_space<vmem>>, vector<2x4x128xf32>
    %34 = arith.addf %33, %13 : vector<2x4x128xf32>
    %c0_21 = arith.constant 0 : index
    %c0_22 = arith.constant 0 : index
    %c0_23 = arith.constant 0 : index
    %35 = vector.load %arg10[%c0_21, %c0_22, %c0_23] : memref<2x4x128xf32, #tpu.memory_space<vmem>>, vector<2x4x128xf32>
    tpu.vector_store %arg10[%c0_21, %c0_22, %c0_23], %34 {strides = array<i32>} : memref<2x4x128xf32, #tpu.memory_space<vmem>>, vector<2x4x128xf32>,
    %c0_24 = arith.constant 0 : index
    %c0_25 = arith.constant 0 : index
    %c0_26 = arith.constant 0 : index
    %36 = vector.load %arg11[%c0_24, %c0_25, %c0_26] : memref<2x4x128xf32, #tpu.memory_space<vmem>>, vector<2x4x128xf32>
    %37 = arith.addf %36, %19 : vector<2x4x128xf32>
    %c0_27 = arith.constant 0 : index
    %c0_28 = arith.constant 0 : index
    %c0_29 = arith.constant 0 : index
    %38 = vector.load %arg11[%c0_27, %c0_28, %c0_29] : memref<2x4x128xf32, #tpu.memory_space<vmem>>, vector<2x4x128xf32>
    tpu.vector_store %arg11[%c0_27, %c0_28, %c0_29], %37 {strides = array<i32>} : memref<2x4x128xf32, #tpu.memory_space<vmem>>, vector<2x4x128xf32>,
    %c1_i32 = arith.constant 1 : i32
    %39 = arith.cmpi eq, %arg1, %c1_i32 : i32
    %40 = arith.extui %39 : i1 to i32
    %c0_i32_30 = arith.constant 0 : i32
    %41 = arith.cmpi ne, %40, %c0_i32_30 : i32
    scf.if %41 {
      %c0_31 = arith.constant 0 : index
      %c0_32 = arith.constant 0 : index
      %c0_33 = arith.constant 0 : index
      %42 = vector.load %arg9[%c0_31, %c0_32, %c0_33] : memref<2x4x128xf32, #tpu.memory_space<vmem>>, vector<2x4x128xf32>
      %cst_34 = arith.constant dense<0.000000e+00> : vector<2x4xf32>
      %43 = vector.multi_reduction <add>, %42, %cst_34 [2] : vector<2x4x128xf32> to vector<2x4xf32>
      %44 = vector.shape_cast %43 : vector<2x4xf32> to vector<1x2x4xf32>
      %c0_35 = arith.constant 0 : index
      %c0_36 = arith.constant 0 : index
      %c0_37 = arith.constant 0 : index
      %45 = vector.load %arg6[%c0_35, %c0_36, %c0_37] : memref<1x2x4xf32, #tpu.memory_space<vmem>>, vector<1x2x4xf32>
      tpu.vector_store %arg6[%c0_35, %c0_36, %c0_37], %44 {strides = array<i32>} : memref<1x2x4xf32, #tpu.memory_space<vmem>>, vector<1x2x4xf32>,
      %c0_38 = arith.constant 0 : index
      %c0_39 = arith.constant 0 : index
      %c0_40 = arith.constant 0 : index
      %46 = vector.load %arg10[%c0_38, %c0_39, %c0_40] : memref<2x4x128xf32, #tpu.memory_space<vmem>>, vector<2x4x128xf32>
      %cst_41 = arith.constant dense<0.000000e+00> : vector<2x4xf32>
      %47 = vector.multi_reduction <add>, %46, %cst_41 [2] : vector<2x4x128xf32> to vector<2x4xf32>
      %48 = vector.shape_cast %47 : vector<2x4xf32> to vector<1x2x4xf32>
      %c0_42 = arith.constant 0 : index
      %c0_43 = arith.constant 0 : index
      %c0_44 = arith.constant 0 : index
      %49 = vector.load %arg7[%c0_42, %c0_43, %c0_44] : memref<1x2x4xf32, #tpu.memory_space<vmem>>, vector<1x2x4xf32>
      tpu.vector_store %arg7[%c0_42, %c0_43, %c0_44], %48 {strides = array<i32>} : memref<1x2x4xf32, #tpu.memory_space<vmem>>, vector<1x2x4xf32>,
      %c0_45 = arith.constant 0 : index
      %c0_46 = arith.constant 0 : index
      %c0_47 = arith.constant 0 : index
      %50 = vector.load %arg11[%c0_45, %c0_46, %c0_47] : memref<2x4x128xf32, #tpu.memory_space<vmem>>, vector<2x4x128xf32>
      %cst_48 = arith.constant dense<0.000000e+00> : vector<2x4xf32>
      %51 = vector.multi_reduction <add>, %50, %cst_48 [2] : vector<2x4x128xf32> to vector<2x4xf32>
      %52 = vector.shape_cast %51 : vector<2x4xf32> to vector<1x2x4xf32>
      %c0_49 = arith.constant 0 : index
      %c0_50 = arith.constant 0 : index
      %c0_51 = arith.constant 0 : index
      %53 = vector.load %arg8[%c0_49, %c0_50, %c0_51] : memref<1x2x4xf32, #tpu.memory_space<vmem>>, vector<1x2x4xf32>
      tpu.vector_store %arg8[%c0_49, %c0_50, %c0_51], %52 {strides = array<i32>} : memref<1x2x4xf32, #tpu.memory_space<vmem>>, vector<1x2x4xf32>,
    } else {
    }
    return
  }
  func.func @transform_0(%arg0: i32, %arg1: i32) -> (i32, i32, i32) {
    %c2_i32 = arith.constant 2 : i32
    %0 = arith.muli %arg0, %c2_i32 : i32
    %1 = arith.addi %0, %arg1 : i32
    %c0_i32 = arith.constant 0 : i32
    %c0_i32_0 = arith.constant 0 : i32
    %c0_i32_1 = arith.constant 0 : i32
    return %c0_i32, %c0_i32_0, %1 : i32, i32, i32
  }
  func.func @transform_1(%arg0: i32, %arg1: i32) -> (i32, i32) {
    %c2_i32 = arith.constant 2 : i32
    %0 = arith.muli %arg0, %c2_i32 : i32
    %1 = arith.addi %0, %arg1 : i32
    %c0_i32 = arith.constant 0 : i32
    %c0_i32_0 = arith.constant 0 : i32
    return %c0_i32, %1 : i32, i32
  }
  func.func @transform_2(%arg0: i32, %arg1: i32) -> (i32, i32) {
    %c2_i32 = arith.constant 2 : i32
    %0 = arith.muli %arg0, %c2_i32 : i32
    %1 = arith.addi %0, %arg1 : i32
    %c0_i32 = arith.constant 0 : i32
    %c0_i32_0 = arith.constant 0 : i32
    return %c0_i32, %1 : i32, i32
  }
  func.func @transform_3(%arg0: i32, %arg1: i32) -> (i32, i32) {
    %c2_i32 = arith.constant 2 : i32
    %0 = arith.muli %arg0, %c2_i32 : i32
    %1 = arith.addi %0, %arg1 : i32
    %c0_i32 = arith.constant 0 : i32
    %c0_i32_0 = arith.constant 0 : i32
    return %c0_i32, %1 : i32, i32
  }
  func.func @transform_4(%arg0: i32, %arg1: i32) -> (i32, i32, i32) {
    %c0_i32 = arith.constant 0 : i32
    %c0_i32_0 = arith.constant 0 : i32
    %c0_i32_1 = arith.constant 0 : i32
    return %arg0, %c0_i32, %c0_i32_0 : i32, i32, i32
  }
  func.func @transform_5(%arg0: i32, %arg1: i32) -> (i32, i32, i32) {
    %c0_i32 = arith.constant 0 : i32
    %c0_i32_0 = arith.constant 0 : i32
    %c0_i32_1 = arith.constant 0 : i32
    return %arg0, %c0_i32, %c0_i32_0 : i32, i32, i32
  }
  func.func @transform_6(%arg0: i32, %arg1: i32) -> (i32, i32, i32) {
    %c0_i32 = arith.constant 0 : i32
    %c0_i32_0 = arith.constant 0 : i32
    %c0_i32_1 = arith.constant 0 : i32
    return %arg0, %c0_i32, %c0_i32_0 : i32, i32, i32
  }
}

</mosaic_0001>

<llo_original>
// kernel: tpu_custom_call.1
$region0: #{tpu_custom_call.1}
  #allocation0 [shape = 'u32[]', space=smem, size = 0x4, offset = 0x4, fixed_abs, tag = 'smem constant byte address 0x4 - core index']
  #allocation1 [shape = 'u32[144,128]{1,0:T(1,128)}', space=vmem, size = 0x12000, scoped, tag = 'internal scratch']
  #allocation2 [shape = 'f32[2,4,128]{2,1,0:T(4,128)}', space=vmem, size = 0x1000, scoped, tag = 'scratch operand']
  #allocation3 [shape = 'f32[2,4,128]{2,1,0:T(4,128)}', space=vmem, size = 0x1000, scoped, tag = 'scratch operand']
  #allocation4 [shape = 'f32[2,4,128]{2,1,0:T(4,128)}', space=vmem, size = 0x1000, scoped, tag = 'scratch operand']
  %s0 = inlined_call_operand.hbm [shape: f32[2,4,512], index: 0, kind: input, shape index: {}]
  %s1 = inlined_call_operand.hbm [shape: s32[2,512], index: 1, kind: input, shape index: {}]
  %s2 = inlined_call_operand.hbm [shape: f32[2,512], index: 2, kind: output, shape index: {0}]
  %s3 = inlined_call_operand.hbm [shape: f32[2,512], index: 3, kind: output, shape index: {1}]
  %s4 = inlined_call_operand.hbm [shape: f32[2,2,4], index: 4, kind: output, shape index: {2}]
  %s5 = inlined_call_operand.hbm [shape: f32[2,2,4], index: 5, kind: output, shape index: {3}]
  %s6 = inlined_call_operand.hbm [shape: f32[2,2,4], index: 6, kind: output, shape index: {4}]
  %7 = xla_tuple %s2, %s3, %s4, %s5, %s6
  %s8 = sld [smem:[#allocation0]]
  $region89: #{tpu_custom_call.1} parent=0
    _
  %s10 = ssub.s32 1, %s8
  %s11 = scalar_select 0, %s10, %s8
  $region1: #{tpu_custom_call.1} parent=0
    #allocation5 [shape = 'u8[8192]{0}', space=vmem, size = 0x2000, scoped, tag = 'input window, operand 0']
    #allocation6 [shape = 's32[2]{0}', space=sflag, size = 0x8, scoped, tag = 'scoped memory for tpu_custom_call.1']
    #allocation7 [shape = 's32[2]{0}', space=sflag, size = 0x8, scoped, tag = 'scoped memory for tpu_custom_call.1']
    #allocation8 [shape = 'u8[2048]{0}', space=vmem, size = 0x800, scoped, tag = 'input window, operand 1']
    #allocation9 [shape = 's32[2]{0}', space=sflag, size = 0x8, scoped, tag = 'scoped memory for tpu_custom_call.1']
    #allocation10 [shape = 'u8[2048]{0}', space=vmem, size = 0x800, scoped, tag = 'output window, operand 0']
    #allocation11 [shape = 'u8[2048]{0}', space=vmem, size = 0x800, scoped, tag = 'output window, operand 1']
    #allocation12 [shape = 's32[2]{0}', space=sflag, size = 0x8, scoped, tag = 'scoped memory for tpu_custom_call.1']
    #allocation13 [shape = 'u8[2048]{0}', space=vmem, size = 0x800, scoped, tag = 'output window, operand 2']
    #allocation14 [shape = 'u8[2048]{0}', space=vmem, size = 0x800, scoped, tag = 'output window, operand 3']
    #allocation15 [shape = 's32[2]{0}', space=sflag, size = 0x8, scoped, tag = 'scoped memory for tpu_custom_call.1']
    #allocation16 [shape = 'u8[2048]{0}', space=vmem, size = 0x800, scoped, tag = 'output window, operand 4']
    %12 = vsyncpa [#allocation6], 0
    %s13 = scalar_lea.sflag [#allocation6], 1
    %14 = vsyncpa %s13, 0
    %15 = vsyncpa [#allocation9], 0
    %s16 = scalar_lea.sflag [#allocation9], 1
    %17 = vsyncpa %s16, 0
    %18 = vsyncpa [#allocation7], 0
    %s19 = scalar_lea.sflag [#allocation7], 1
    %20 = vsyncpa %s19, 0
    %21 = vsyncpa [#allocation12], 0
    %s22 = scalar_lea.sflag [#allocation12], 1
    %23 = vsyncpa %s22, 0
    %24 = vsyncpa [#allocation15], 0
    %s25 = scalar_lea.sflag [#allocation15], 1
    %26 = vsyncpa %s25, 0
    loop: start=0, step=1, limit=6
    $region2: #{tpu_custom_call.1} parent=1 // loop_pre_header
      _
    $region3: #{tpu_custom_call.1} parent=1 // loop_header
      %s28 = sphi 0, %s32
      %p29 = scmp.ge.s32.totalorder %s28, 6
      %s35 = sphi 0, %s47
      %s36 = sphi 0, %s43
      %s37 = sphi 0, %s35
      %s38 = sphi 0, %s36
      %s39 = sphi 0, %s37
      %s40 = sphi 0, %s38
      %s54 = sphi 0, %s56
      %s57 = sphi 0, %s54
      %s58 = sphi 0, %s57
      %s74 = sphi 0, %s58
      %s84 = sphi 0, %s86
      %s87 = sphi 0, %s84
      %s88 = sphi 0, %s87
      %s104 = sphi 0, %s88
      %s114 = sphi 0, %s116
      %s117 = sphi 0, %s114
      %s118 = sphi 0, %s117
      %s134 = sphi 0, %s118
      %s144 = sphi 0, %s146
      %s147 = sphi 0, %s144
      %s148 = sphi 0, %s147
      %s164 = sphi 0, %s148
      %s170 = sphi 0, %s172
      %s173 = sphi 0, %s170
      %s174 = sphi 0, %s173
      %s190 = sphi 0, %s174
      %s196 = sphi 0, %s198
      %s199 = sphi 0, %s196
      %s200 = sphi 0, %s199
      %s216 = sphi 0, %s200
      %s222 = sphi 0, %s224
      %s225 = sphi 0, %s222
      %s226 = sphi 0, %s225
      %s242 = sphi 0, %s226
    $region4: #{tpu_custom_call.1} parent=1 // loop_header_branch
      %31 = sbr.rel (%p29) target = $region8
    $region5: #{tpu_custom_call.1} parent=1 // loop_body
      %s33 = ssub.s32 %s28, 1
      %s34 = ssub.s32 %s28, 2
      %s41 = sadd.s32 1, %s36
      %p42 = scmp.ge.s32.totalorder %s41, 2
      %s43 = scalar_select %p42, 0, %s41
      %s44 = sadd.s32 1, %s35
      %s45 = scalar_select %p42, %s44, %s35
      %p46 = scmp.ge.s32.totalorder %s45, 2
      %s47 = scalar_select %p46, 0, %s45
      %s48 = smul.u32 %s35, 2
      %s49 = sadd.s32 %s48, %s36
      %s50 = smul.u32 %s47, 2
      %s51 = sadd.s32 %s50, %s43
      %s52 = ssub.s32 %s49, %s51
      %p53 = scmp.eq.s32.totalorder %s52, 0
      %s55 = sadd.s32 %s54, 1
      %s56 = scalar_select %p53, %s54, %s55
      %p59 = pneg %p53
      %p60 = scmp.eq.s32.totalorder %s28, 3
      %p61 = por %p59, %p60
      %p62 = scmp.ne.s32.totalorder %s54, %s57
      %p63 = scmp.eq.s32.totalorder %s28, 0
      %p64 = por %p62, %p63
      %p65 = scmp.ne.s32.totalorder %s54, %s57
      %p66 = scmp.eq.s32.totalorder %s33, 3
      %p67 = por %p65, %p66
      %p68 = scmp.ne.s32.totalorder %s57, %s58
      %p69 = scmp.eq.s32.totalorder %s33, 0
      %p70 = por %p68, %p69
      %p71 = scmp.ne.s32.totalorder %s57, %s58
      %p72 = scmp.eq.s32.totalorder %s34, 3
      %p73 = por %p71, %p72
      %p75 = scmp.ne.s32.totalorder %s58, %s74
      %p76 = scmp.eq.s32.totalorder %s34, 0
      %p77 = por %p75, %p76
      %s78 = smul.u32 %s35, 2
      %s79 = sadd.s32 %s78, %s36
      %s80 = smul.u32 %s47, 2
      %s81 = sadd.s32 %s80, %s43
      %s82 = ssub.s32 %s79, %s81
      %p83 = scmp.eq.s32.totalorder %s82, 0
      %s85 = sadd.s32 %s84, 1
      %s86 = scalar_select %p83, %s84, %s85
      %p89 = pneg %p83
      %p90 = scmp.eq.s32.totalorder %s28, 3
      %p91 = por %p89, %p90
      %p92 = scmp.ne.s32.totalorder %s84, %s87
      %p93 = scmp.eq.s32.totalorder %s28, 0
      %p94 = por %p92, %p93
      %p95 = scmp.ne.s32.totalorder %s84, %s87
      %p96 = scmp.eq.s32.totalorder %s33, 3
      %p97 = por %p95, %p96
      %p98 = scmp.ne.s32.totalorder %s87, %s88
      %p99 = scmp.eq.s32.totalorder %s33, 0
      %p100 = por %p98, %p99
      %p101 = scmp.ne.s32.totalorder %s87, %s88
      %p102 = scmp.eq.s32.totalorder %s34, 3
      %p103 = por %p101, %p102
      %p105 = scmp.ne.s32.totalorder %s88, %s104
      %p106 = scmp.eq.s32.totalorder %s34, 0
      %p107 = por %p105, %p106
      %s108 = smul.u32 %s35, 2
      %s109 = sadd.s32 %s108, %s36
      %s110 = smul.u32 %s47, 2
      %s111 = sadd.s32 %s110, %s43
      %s112 = ssub.s32 %s109, %s111
      %p113 = scmp.eq.s32.totalorder %s112, 0
      %s115 = sadd.s32 %s114, 1
      %s116 = scalar_select %p113, %s114, %s115
      %p119 = pneg %p113
      %p120 = scmp.eq.s32.totalorder %s28, 3
      %p121 = por %p119, %p120
      %p122 = scmp.ne.s32.totalorder %s114, %s117
      %p123 = scmp.eq.s32.totalorder %s28, 0
      %p124 = por %p122, %p123
      %p125 = scmp.ne.s32.totalorder %s114, %s117
      %p126 = scmp.eq.s32.totalorder %s33, 3
      %p127 = por %p125, %p126
      %p128 = scmp.ne.s32.totalorder %s117, %s118
      %p129 = scmp.eq.s32.totalorder %s33, 0
      %p130 = por %p128, %p129
      %p131 = scmp.ne.s32.totalorder %s117, %s118
      %p132 = scmp.eq.s32.totalorder %s34, 3
      %p133 = por %p131, %p132
      %p135 = scmp.ne.s32.totalorder %s118, %s134
      %p136 = scmp.eq.s32.totalorder %s34, 0
      %p137 = por %p135, %p136
      %s138 = smul.u32 %s35, 2
      %s139 = sadd.s32 %s138, %s36
      %s140 = smul.u32 %s47, 2
      %s141 = sadd.s32 %s140, %s43
      %s142 = ssub.s32 %s139, %s141
      %p143 = scmp.eq.s32.totalorder %s142, 0
      %s145 = sadd.s32 %s144, 1
      %s146 = scalar_select %p143, %s144, %s145
      %p149 = pneg %p143
      %p150 = scmp.eq.s32.totalorder %s28, 3
      %p151 = por %p149, %p150
      %p152 = scmp.ne.s32.totalorder %s144, %s147
      %p153 = scmp.eq.s32.totalorder %s28, 0
      %p154 = por %p152, %p153
      %p155 = scmp.ne.s32.totalorder %s144, %s147
      %p156 = scmp.eq.s32.totalorder %s33, 3
      %p157 = por %p155, %p156
      %p158 = scmp.ne.s32.totalorder %s147, %s148
      %p159 = scmp.eq.s32.totalorder %s33, 0
      %p160 = por %p158, %p159
      %p161 = scmp.ne.s32.totalorder %s147, %s148
      %p162 = scmp.eq.s32.totalorder %s34, 3
      %p163 = por %p161, %p162
      %p165 = scmp.ne.s32.totalorder %s148, %s164
      %p166 = scmp.eq.s32.totalorder %s34, 0
      %p167 = por %p165, %p166
      %s168 = ssub.s32 %s35, %s47
      %p169 = scmp.eq.s32.totalorder %s168, 0
      %s171 = sadd.s32 %s170, 1
      %s172 = scalar_select %p169, %s170, %s171
      %p175 = pneg %p169
      %p176 = scmp.eq.s32.totalorder %s28, 3
      %p177 = por %p175, %p176
      %p178 = scmp.ne.s32.totalorder %s170, %s173
      %p179 = scmp.eq.s32.totalorder %s28, 0
      %p180 = por %p178, %p179
      %p181 = scmp.ne.s32.totalorder %s170, %s173
      %p182 = scmp.eq.s32.totalorder %s33, 3
      %p183 = por %p181, %p182
      %p184 = scmp.ne.s32.totalorder %s173, %s174
      %p185 = scmp.eq.s32.totalorder %s33, 0
      %p186 = por %p184, %p185
      %p187 = scmp.ne.s32.totalorder %s173, %s174
      %p188 = scmp.eq.s32.totalorder %s34, 3
      %p189 = por %p187, %p188
      %p191 = scmp.ne.s32.totalorder %s174, %s190
      %p192 = scmp.eq.s32.totalorder %s34, 0
      %p193 = por %p191, %p192
      %s194 = ssub.s32 %s35, %s47
      %p195 = scmp.eq.s32.totalorder %s194, 0
      %s197 = sadd.s32 %s196, 1
      %s198 = scalar_select %p195, %s196, %s197
      %p201 = pneg %p195
      %p202 = scmp.eq.s32.totalorder %s28, 3
      %p203 = por %p201, %p202
      %p204 = scmp.ne.s32.totalorder %s196, %s199
      %p205 = scmp.eq.s32.totalorder %s28, 0
      %p206 = por %p204, %p205
      %p207 = scmp.ne.s32.totalorder %s196, %s199
      %p208 = scmp.eq.s32.totalorder %s33, 3
      %p209 = por %p207, %p208
      %p210 = scmp.ne.s32.totalorder %s199, %s200
      %p211 = scmp.eq.s32.totalorder %s33, 0
      %p212 = por %p210, %p211
      %p213 = scmp.ne.s32.totalorder %s199, %s200
      %p214 = scmp.eq.s32.totalorder %s34, 3
      %p215 = por %p213, %p214
      %p217 = scmp.ne.s32.totalorder %s200, %s216
      %p218 = scmp.eq.s32.totalorder %s34, 0
      %p219 = por %p217, %p218
      %s220 = ssub.s32 %s35, %s47
      %p221 = scmp.eq.s32.totalorder %s220, 0
      %s223 = sadd.s32 %s222, 1
      %s224 = scalar_select %p221, %s222, %s223
      %p227 = pneg %p221
      %p228 = scmp.eq.s32.totalorder %s28, 3
      %p229 = por %p227, %p228
      %p230 = scmp.ne.s32.totalorder %s222, %s225
      %p231 = scmp.eq.s32.totalorder %s28, 0
      %p232 = por %p230, %p231
      %p233 = scmp.ne.s32.totalorder %s222, %s225
      %p234 = scmp.eq.s32.totalorder %s33, 3
      %p235 = por %p233, %p234
      %p236 = scmp.ne.s32.totalorder %s225, %s226
      %p237 = scmp.eq.s32.totalorder %s33, 0
      %p238 = por %p236, %p237
      %p239 = scmp.ne.s32.totalorder %s225, %s226
      %p240 = scmp.eq.s32.totalorder %s34, 3
      %p241 = por %p239, %p240
      %p243 = scmp.ne.s32.totalorder %s226, %s242
      %p244 = scmp.eq.s32.totalorder %s34, 0
      %p245 = por %p243, %p244
      %p246 = scmp.le.s32.totalorder 1, %s28
      %p247 = scmp.lt.s32.totalorder %s28, 5
      %p248 = pnand %p246, %p247
      %p249 = pneg %p248
      // Predicated region
      $region9: #{tpu_custom_call.1} parent=5 // pred_check
        _
      $region10: #{tpu_custom_call.1} parent=5 // pred_check_branch
        %251 = sbr.rel (%p248) target = $region12
      $region11: #{tpu_custom_call.1} parent=5 // pred_region
        %s252 = ssub.s32 %s28, 1
      $region12: #{tpu_custom_call.1} parent=5 // pred_fallthru
        _
      %p253 = scmp.lt.s32.totalorder %s28, 4
      // Predicated region
      $region13: #{tpu_custom_call.1} parent=5 // pred_check
        %p254 = pneg %p253
      $region14: #{tpu_custom_call.1} parent=5 // pred_check_branch
        %256 = sbr.rel (%p254) target = $region16
      $region15: #{tpu_custom_call.1} parent=5 // pred_region
        // Predicated region
        $region17: #{tpu_custom_call.1} parent=15 // pred_check
          %p257 = pneg %p64
        $region18: #{tpu_custom_call.1} parent=15 // pred_check_branch
          %259 = sbr.rel (%p257) target = $region20
        $region19: #{tpu_custom_call.1} parent=15 // pred_region
          %s260 = sand.u32 %s54, 1
          %s261 = scalar_lea.sflag [#allocation6], %s260
          %s262 = sand.u32 %s54, 1
          %s263 = smul.addr %s262, 8
          %s264 = scalar_lea.vmem [#allocation5], %s263
          %s265 = smul.u32 %s35, 2
          %s266 = sadd.s32 %s265, %s36
          %s268 = ssub.s32 128, 128
          %269 = vsyncadd %s261, %s268
          %s270 = smul.addr %s266, 64
          %s271 = scalar_lea.hbm %s0, %s270
          %s272 = sshll.u32 %s264, 4
          %s273 = int_to_ptr.vmem [resolvable:$true] %s272
          %278 = dma.hbm_to_vmem [thread:$0]  %s271, 128, %s273, %s261, 256, 64, 4
        $region20: #{tpu_custom_call.1} parent=15 // pred_fallthru
          _
        // Predicated region
        $region21: #{tpu_custom_call.1} parent=15 // pred_check
          %p279 = pneg %p94
        $region22: #{tpu_custom_call.1} parent=15 // pred_check_branch
          %281 = sbr.rel (%p279) target = $region24
        $region23: #{tpu_custom_call.1} parent=15 // pred_region
          %s282 = sand.u32 %s84, 1
          %s283 = scalar_lea.sflag [#allocation9], %s282
          %s284 = sand.u32 %s84, 1
          %s285 = smul.addr %s284, 2
          %s286 = scalar_lea.vmem [#allocation8], %s285
          %s287 = smul.u32 %s35, 2
          %s288 = sadd.s32 %s287, %s36
          %s290 = ssub.s32 32, 32
          %291 = vsyncadd %s283, %s290
          %s292 = smul.addr %s288, 32
          %s293 = scalar_lea.hbm %s1, %s292
          %s295 = sshll.u32 %s286, 4
          %s296 = int_to_ptr.vmem [resolvable:$true] %s295
          %298 = dma.hbm_to_vmem [thread:$0]  %s293, 32, %s296, %s283
        $region24: #{tpu_custom_call.1} parent=15 // pred_fallthru
          _
      $region16: #{tpu_custom_call.1} parent=5 // pred_fallthru
        _
      %p299 = scmp.le.s32.totalorder 1, %s28
      %p300 = scmp.lt.s32.totalorder %s28, 5
      %p301 = pnand %p299, %p300
      %p302 = pneg %p301
      // Predicated region
      $region25: #{tpu_custom_call.1} parent=5 // pred_check
        _
      $region26: #{tpu_custom_call.1} parent=5 // pred_check_branch
        %304 = sbr.rel (%p301) target = $region28
      $region27: #{tpu_custom_call.1} parent=5 // pred_region
        %s305 = ssub.s32 %s28, 1
        %s306 = sand.u32 %s57, 1
        %s307 = scalar_lea.sflag [#allocation6], %s306
        %s308 = sand.u32 %s57, 1
        %s309 = smul.addr %s308, 8
        %s310 = scalar_lea.vmem [#allocation5], %s309
        // Predicated region
        $region29: #{tpu_custom_call.1} parent=27 // pred_check
          %p311 = pneg %p70
        $region30: #{tpu_custom_call.1} parent=27 // pred_check_branch
          %313 = sbr.rel (%p311) target = $region32
        $region31: #{tpu_custom_call.1} parent=27 // pred_region
          %314 = dma.done %s307, 128
        $region32: #{tpu_custom_call.1} parent=27 // pred_fallthru
          _
        %s315 = sand.u32 %s87, 1
        %s316 = scalar_lea.sflag [#allocation9], %s315
        %s317 = sand.u32 %s87, 1
        %s318 = smul.addr %s317, 2
        %s319 = scalar_lea.vmem [#allocation8], %s318
        // Predicated region
        $region33: #{tpu_custom_call.1} parent=27 // pred_check
          %p320 = pneg %p100
        $region34: #{tpu_custom_call.1} parent=27 // pred_check_branch
          %322 = sbr.rel (%p320) target = $region36
        $region35: #{tpu_custom_call.1} parent=27 // pred_region
          %323 = dma.done %s316, 32
        $region36: #{tpu_custom_call.1} parent=27 // pred_fallthru
          _
        %s324 = sand.u32 %s57, 1
        %s325 = scalar_lea.sflag [#allocation6], %s324
        %s326 = sand.u32 %s57, 1
        %s327 = smul.addr %s326, 8
        %s328 = scalar_lea.vmem [#allocation5], %s327
        %p329 = pneg %p70
        %p330 = pneg %p67
        %s331 = sand.u32 %s87, 1
        %s332 = scalar_lea.sflag [#allocation9], %s331
        %s333 = sand.u32 %s87, 1
        %s334 = smul.addr %s333, 2
        %s335 = scalar_lea.vmem [#allocation8], %s334
        %p336 = pneg %p100
        %p337 = pneg %p97
        %p338 = pneg %p130
        %p339 = pneg %p127
        %s340 = sand.u32 %s117, 1
        %s341 = scalar_lea.sflag [#allocation7], %s340
        %s342 = sand.u32 %s117, 1
        %s343 = smul.addr %s342, 2
        %s344 = scalar_lea.vmem [#allocation10], %s343
        %p345 = pneg %p160
        %p346 = pneg %p157
        %s347 = sand.u32 %s33, 1
        %s348 = scalar_lea.sflag [#allocation12], %s347
        %s349 = sand.u32 %s147, 1
        %s350 = smul.addr %s349, 2
        %s351 = scalar_lea.vmem [#allocation11], %s350
        %p352 = pneg %p186
        %p353 = pneg %p183
        %s354 = sand.u32 %s33, 1
        %s355 = scalar_lea.sflag [#allocation12], %s354
        %s356 = sand.u32 %s173, 1
        %s357 = smul.addr %s356, 2
        %s358 = scalar_lea.vmem [#allocation13], %s357
        %p359 = pneg %p212
        %p360 = pneg %p209
        %s361 = sand.u32 %s33, 1
        %s362 = scalar_lea.sflag [#allocation15], %s361
        %s363 = sand.u32 %s199, 1
        %s364 = smul.addr %s363, 2
        %s365 = scalar_lea.vmem [#allocation14], %s364
        %p366 = pneg %p238
        %p367 = pneg %p235
        %s368 = sand.u32 %s33, 1
        %s369 = scalar_lea.sflag [#allocation15], %s368
        %s370 = sand.u32 %s225, 1
        %s371 = smul.addr %s370, 2
        %s372 = scalar_lea.vmem [#allocation16], %s371
        %s373 = smul.u32 %s37, 2
        %s374 = sadd.s32 %s373, %s38
        %s375 = smul.u32 %s37, 2
        %s376 = sadd.s32 %s375, %s38
        %s377 = smul.u32 %s37, 2
        %s378 = sadd.s32 %s377, %s38
        %s379 = smul.u32 %s37, 2
        %s380 = sadd.s32 %s379, %s38
        %p381 = scmp.eq.s32.totalorder %s38, 0
        // Predicated region
        $region37: #{tpu_custom_call.1} parent=27 // pred_check
          %p382 = pneg %p381
        $region38: #{tpu_custom_call.1} parent=27 // pred_check_branch
          %384 = sbr.rel (%p382) target = $region40
        $region39: #{tpu_custom_call.1} parent=27 // pred_region
          %385 = vst [vmem:[#allocation2] sm:$0xf] 0.0
          %386 = vst [vmem:[#allocation2 + $0x4] sm:$0xf] 0.0
          %387 = vst [vmem:[#allocation3] sm:$0xf] 0.0
          %388 = vst [vmem:[#allocation3 + $0x4] sm:$0xf] 0.0
          %389 = vst [vmem:[#allocation4] sm:$0xf] 0.0
          %390 = vst [vmem:[#allocation4 + $0x4] sm:$0xf] 0.0
        $region40: #{tpu_custom_call.1} parent=27 // pred_fallthru
          _
        %v391 = vld [vmem:[%s310] sm:$0xf]
        %v392 = vld [vmem:[%s310 + $0x4] sm:$0xf]
        %v393 = vld [vmem:[%s319] sm:$0x3]
        %vm394 = vcmask 1043456
        %v395 = vsel %vm394, %v391, -inf
        %v396 = vrot.slane %v395, 4
        %v397 = vmax.f32 %v395, %v396
        %v398 = vrot.slane %v397, 2
        %v399 = vmax.f32 %v397, %v398
        %v400 = vrot.slane %v399, 1
        %v401 = vmax.f32 %v399, %v400
        %v402 = vsel %vm394, %v392, -inf
        %v403 = vrot.slane %v402, 4
        %v404 = vmax.f32 %v402, %v403
        %v405 = vrot.slane %v404, 2
        %v406 = vmax.f32 %v404, %v405
        %v407 = vrot.slane %v406, 1
        %v408 = vmax.f32 %v406, %v407
        %v409 = vsub.f32 %v391, %v401
        %v410 = vsub.f32 %v392, %v408
        %v411 = vmul.f32 %v409, 1.442695
        %v412 = vpow.pop %v411
        %v413 = vmul.f32 %v410, 1.442695
        %v414 = vpow.pop %v413
        %v415 = vsel %vm394, %v412, 0.0
        %v416 = vrot.slane %v415, 4
        %v417 = vadd.f32 %v415, %v416
        %v418 = vrot.slane %v417, 2
        %v419 = vadd.f32 %v417, %v418
        %v420 = vrot.slane %v419, 1
        %v421 = vadd.f32 %v419, %v420
        %v422 = vsel %vm394, %v414, 0.0
        %v423 = vrot.slane %v422, 4
        %v424 = vadd.f32 %v422, %v423
        %v425 = vrot.slane %v424, 2
        %v426 = vadd.f32 %v424, %v425
        %v427 = vrot.slane %v426, 1
        %v428 = vadd.f32 %v426, %v427
        %v429 = vrcp.pop %v421
        %v430 = vmul.f32 %v412, %v429
        %v431 = vrcp.pop %v428
        %v432 = vmul.f32 %v414, %v431
        %v433 = vlaneseq
        %v434 = vshrl.u32 %v433, 7
        %v436 = vunpack.c.l.s4 1966171168
        %v437 = vunpack.c.0.s8 %v436
        %v438 = vlaneseq
        %v439 = vshrl.u32 %v438, 7
        %v440 = vsub.s32 %v437, %v439
        %v441 = vrot.slane %v393, %v440
        %v442 = vcombine.high %v441, %v441
        %v444 = vunpack.c.l.s4 1966171168
        %v445 = vunpack.c.0.s8 %v444
        %v446 = vlaneseq
        %v447 = vshrl.u32 %v446, 7
        %v448 = vsub.s32 %v445, %v447
        %v449 = vrot.slane %v441, %v448
        %v451 = vunpack.c.l.s4 1966171168
        %v452 = vunpack.c.0.s8 %v451
        %v453 = vlaneseq
        %v454 = vshrl.u32 %v453, 7
        %v455 = vsub.s32 %v452, %v454
        %v456 = vrot.slane %v442, %v455
        %v457 = vlaneseq
        %v458 = vshrl.u32 %v457, 7
        %v459 = vsub.s32 0, %v458
        %v460 = vrot.slane %v449, %v459
        %v461 = vlaneseq
        %v462 = vshrl.u32 %v461, 7
        %v463 = vsub.s32 0, %v462
        %v464 = vrot.slane %v456, %v463
        %vm465 = vcmp.eq.s32.totalorder %v434, %v460
        %vm466 = vcmp.eq.s32.totalorder %v434, %v464
        %v467 = vsel %vm465, 1, 0
        %v468 = vsel %vm466, 1, 0
        %v469 = vcvt.s32.f32 %v467
        %v470 = vcvt.s32.f32 %v468
        %v471 = vsel %vm394, %v430, -inf
        %v472 = vrot.slane %v471, 4
        %v473 = vmax.f32 %v471, %v472
        %v474 = vrot.slane %v473, 2
        %v475 = vmax.f32 %v473, %v474
        %v476 = vrot.slane %v475, 1
        %v477 = vmax.f32 %v475, %v476
        %v478 = vsel %vm394, %v432, -inf
        %v479 = vrot.slane %v478, 4
        %v480 = vmax.f32 %v478, %v479
        %v481 = vrot.slane %v480, 2
        %v482 = vmax.f32 %v480, %v481
        %v483 = vrot.slane %v482, 1
        %v484 = vmax.f32 %v482, %v483
        %vm487 = vcmask 1041409
        %v488 = vsel %vm487, %v484, %v477
        %490 = vst [vmem:[%s344] sm:$0x3] %v488
        %v491 = vmul.f32 %v391, %v469
        %v492 = vmul.f32 %v392, %v470
        %v493 = vsel %vm394, %v491, 0.0
        %v494 = vrot.slane %v493, 4
        %v495 = vadd.f32 %v493, %v494
        %v496 = vrot.slane %v495, 2
        %v497 = vadd.f32 %v495, %v496
        %v498 = vrot.slane %v497, 1
        %v499 = vadd.f32 %v497, %v498
        %v500 = vsel %vm394, %v492, 0.0
        %v501 = vrot.slane %v500, 4
        %v502 = vadd.f32 %v500, %v501
        %v503 = vrot.slane %v502, 2
        %v504 = vadd.f32 %v502, %v503
        %v505 = vrot.slane %v504, 1
        %v506 = vadd.f32 %v504, %v505
        %vm507 = vcmp.ge.f32.partialorder %v499, %v401
        %vm508 = vcmp.ge.f32.partialorder %v506, %v408
        %v509 = vsel %vm507, 1, 0
        %v510 = vsel %vm508, 1, 0
        %v511 = vcvt.s32.f32 %v509
        %v512 = vcvt.s32.f32 %v510
        %v515 = vsel %vm487, %v512, %v511
        %517 = vst [vmem:[%s351] sm:$0x3] %v515
        %v518 = vld [vmem:[#allocation2] sm:$0xf]
        %v519 = vld [vmem:[#allocation2 + $0x4] sm:$0xf]
        %v520 = vmul.f32 %v430, %v469
        %v521 = vmul.f32 %v432, %v470
        %v522 = vadd.f32 %v518, %v520
        %v523 = vadd.f32 %v519, %v521
        %524 = vst [vmem:[#allocation2] sm:$0xf] %v522
        %525 = vst [vmem:[#allocation2 + $0x4] sm:$0xf] %v523
        %v526 = vld [vmem:[#allocation3] sm:$0xf]
        %v527 = vld [vmem:[#allocation3 + $0x4] sm:$0xf]
        %v528 = vadd.f32 %v526, %v430
        %v529 = vadd.f32 %v527, %v432
        %530 = vst [vmem:[#allocation3] sm:$0xf] %v528
        %531 = vst [vmem:[#allocation3 + $0x4] sm:$0xf] %v529
        %v532 = vld [vmem:[#allocation4] sm:$0xf]
        %v533 = vld [vmem:[#allocation4 + $0x4] sm:$0xf]
        %v534 = vadd.f32 %v532, %v469
        %v535 = vadd.f32 %v533, %v470
        %536 = vst [vmem:[#allocation4] sm:$0xf] %v534
        %537 = vst [vmem:[#allocation4 + $0x4] sm:$0xf] %v535
        %p538 = scmp.eq.s32.totalorder %s38, 1
        // Predicated region
        $region41: #{tpu_custom_call.1} parent=27 // pred_check
          %p539 = pneg %p538
        $region42: #{tpu_custom_call.1} parent=27 // pred_check_branch
          %541 = sbr.rel (%p539) target = $region44
        $region43: #{tpu_custom_call.1} parent=27 // pred_region
          %v542 = vld [vmem:[#allocation2] sm:$0xf]
          %v543 = vld [vmem:[#allocation2 + $0x4] sm:$0xf]
          %v544 = vsel %vm394, %v542, 0.0
          %545 = vadd.xlane.f32.xlu0 %v544
          %v546 = vpop.xlane.xlu0 %545
          %v547 = vsel %vm394, %v543, 0.0
          %548 = vadd.xlane.f32.xlu0 %v547
          %v549 = vpop.xlane.xlu0 %548
          %v552 = vlaneseq
          %v553 = vand.u32 %v552, 127
          %v554 = vlaneseq
          %v555 = vshrl.u32 %v554, 7
          %v556 = vsub.s32 %v553, %v555
          %v557 = vrot.slane %v546, %v556
          %v558 = vlaneseq
          %v559 = vshrl.u32 %v558, 7
          %v560 = vsub.s32 %v553, %v559
          %v561 = vrot.slane %v549, %v560
          %v562 = vsel %vm487, %v561, %v557
          %vm564 = vcmask 25600
          %565 = vst.msk [vmem:[%s358] sm:$0x3] %vm564, %v562
          %v566 = vld [vmem:[#allocation3] sm:$0xf]
          %v567 = vld [vmem:[#allocation3 + $0x4] sm:$0xf]
          %v568 = vsel %vm394, %v566, 0.0
          %569 = vadd.xlane.f32.xlu0 %v568
          %v570 = vpop.xlane.xlu0 %569
          %v571 = vsel %vm394, %v567, 0.0
          %572 = vadd.xlane.f32.xlu0 %v571
          %v573 = vpop.xlane.xlu0 %572
          %v576 = vlaneseq
          %v577 = vshrl.u32 %v576, 7
          %v578 = vsub.s32 %v553, %v577
          %v579 = vrot.slane %v570, %v578
          %v580 = vlaneseq
          %v581 = vshrl.u32 %v580, 7
          %v582 = vsub.s32 %v553, %v581
          %v583 = vrot.slane %v573, %v582
          %v584 = vsel %vm487, %v583, %v579
          %586 = vst.msk [vmem:[%s365] sm:$0x3] %vm564, %v584
          %v587 = vld [vmem:[#allocation4] sm:$0xf]
          %v588 = vld [vmem:[#allocation4 + $0x4] sm:$0xf]
          %v589 = vsel %vm394, %v587, 0.0
          %590 = vadd.xlane.f32.xlu0 %v589
          %v591 = vpop.xlane.xlu0 %590
          %v592 = vsel %vm394, %v588, 0.0
          %593 = vadd.xlane.f32.xlu0 %v592
          %v594 = vpop.xlane.xlu0 %593
          %v597 = vlaneseq
          %v598 = vshrl.u32 %v597, 7
          %v599 = vsub.s32 %v553, %v598
          %v600 = vrot.slane %v591, %v599
          %v601 = vlaneseq
          %v602 = vshrl.u32 %v601, 7
          %v603 = vsub.s32 %v553, %v602
          %v604 = vrot.slane %v594, %v603
          %v605 = vsel %vm487, %v604, %v600
          %607 = vst.msk [vmem:[%s372] sm:$0x3] %vm564, %v605
        $region44: #{tpu_custom_call.1} parent=27 // pred_fallthru
          _
        %s608 = sand.u32 %s117, 1
        %s609 = scalar_lea.sflag [#allocation7], %s608
        %s610 = sand.u32 %s117, 1
        %s611 = smul.addr %s610, 2
        %s612 = scalar_lea.vmem [#allocation10], %s611
        %s613 = sand.u32 %s33, 1
        %s614 = scalar_lea.sflag [#allocation12], %s613
        %s615 = sand.u32 %s147, 1
        %s616 = smul.addr %s615, 2
        %s617 = scalar_lea.vmem [#allocation11], %s616
        %s618 = sand.u32 %s33, 1
        %s619 = scalar_lea.sflag [#allocation12], %s618
        %s620 = sand.u32 %s173, 1
        %s621 = smul.addr %s620, 2
        %s622 = scalar_lea.vmem [#allocation13], %s621
        %s623 = sand.u32 %s33, 1
        %s624 = scalar_lea.sflag [#allocation15], %s623
        %s625 = sand.u32 %s199, 1
        %s626 = smul.addr %s625, 2
        %s627 = scalar_lea.vmem [#allocation14], %s626
        %s628 = sand.u32 %s33, 1
        %s629 = scalar_lea.sflag [#allocation15], %s628
        %s630 = sand.u32 %s225, 1
        %s631 = smul.addr %s630, 2
        %s632 = scalar_lea.vmem [#allocation16], %s631
        // Predicated region
        $region45: #{tpu_custom_call.1} parent=27 // pred_check
          %p633 = pneg %p127
        $region46: #{tpu_custom_call.1} parent=27 // pred_check_branch
          %635 = sbr.rel (%p633) target = $region48
        $region47: #{tpu_custom_call.1} parent=27 // pred_region
          %s636 = smul.u32 %s37, 2
          %s637 = sadd.s32 %s636, %s38
          %s639 = ssub.s32 32, 32
          %640 = vsyncadd %s609, %s639
          %s641 = smul.addr %s637, 32
          %s642 = scalar_lea.hbm %s2, %s641
          %s644 = sshll.u32 %s612, 4
          %s645 = int_to_ptr.vmem [resolvable:$true] %s644
          %647 = dma.vmem_to_hbm [thread:$0]  %s645, 32, %s642, %s609
        $region48: #{tpu_custom_call.1} parent=27 // pred_fallthru
          _
        // Predicated region
        $region49: #{tpu_custom_call.1} parent=27 // pred_check
          %p648 = pneg %p157
        $region50: #{tpu_custom_call.1} parent=27 // pred_check_branch
          %650 = sbr.rel (%p648) target = $region52
        $region51: #{tpu_custom_call.1} parent=27 // pred_region
          %s651 = smul.u32 %s37, 2
          %s652 = sadd.s32 %s651, %s38
          %s654 = ssub.s32 32, 32
          %655 = vsyncadd %s614, %s654
          %s656 = smul.addr %s652, 32
          %s657 = scalar_lea.hbm %s3, %s656
          %s659 = sshll.u32 %s617, 4
          %s660 = int_to_ptr.vmem [resolvable:$true] %s659
          %662 = dma.vmem_to_hbm [thread:$0]  %s660, 32, %s657, %s614
        $region52: #{tpu_custom_call.1} parent=27 // pred_fallthru
          _
        // Predicated region
        $region53: #{tpu_custom_call.1} parent=27 // pred_check
          %p663 = pneg %p183
        $region54: #{tpu_custom_call.1} parent=27 // pred_check_branch
          %665 = sbr.rel (%p663) target = $region56
        $region55: #{tpu_custom_call.1} parent=27 // pred_region
          %s667 = ssub.s32 32, 32
          %668 = vsyncadd %s619, %s667
          %s669 = smul.addr %s37, 32
          %s670 = scalar_lea.hbm %s4, %s669
          %s672 = sshll.u32 %s622, 4
          %s673 = int_to_ptr.vmem [resolvable:$true] %s672
          %675 = dma.vmem_to_hbm [thread:$0]  %s673, 32, %s670, %s619
        $region56: #{tpu_custom_call.1} parent=27 // pred_fallthru
          _
        // Predicated region
        $region57: #{tpu_custom_call.1} parent=27 // pred_check
          %p676 = pneg %p209
        $region58: #{tpu_custom_call.1} parent=27 // pred_check_branch
          %678 = sbr.rel (%p676) target = $region60
        $region59: #{tpu_custom_call.1} parent=27 // pred_region
          %s680 = ssub.s32 32, 32
          %681 = vsyncadd %s624, %s680
          %s682 = smul.addr %s37, 32
          %s683 = scalar_lea.hbm %s5, %s682
          %s685 = sshll.u32 %s627, 4
          %s686 = int_to_ptr.vmem [resolvable:$true] %s685
          %688 = dma.vmem_to_hbm [thread:$0]  %s686, 32, %s683, %s624
        $region60: #{tpu_custom_call.1} parent=27 // pred_fallthru
          _
        // Predicated region
        $region61: #{tpu_custom_call.1} parent=27 // pred_check
          %p689 = pneg %p235
        $region62: #{tpu_custom_call.1} parent=27 // pred_check_branch
          %691 = sbr.rel (%p689) target = $region64
        $region63: #{tpu_custom_call.1} parent=27 // pred_region
          %s693 = ssub.s32 32, 32
          %694 = vsyncadd %s629, %s693
          %s695 = smul.addr %s37, 32
          %s696 = scalar_lea.hbm %s6, %s695
          %s698 = sshll.u32 %s632, 4
          %s699 = int_to_ptr.vmem [resolvable:$true] %s698
          %701 = dma.vmem_to_hbm [thread:$0]  %s699, 32, %s696, %s629
        $region64: #{tpu_custom_call.1} parent=27 // pred_fallthru
          _
      $region28: #{tpu_custom_call.1} parent=5 // pred_fallthru
        _
      %p702 = scmp.le.s32.totalorder 2, %s28
      // Predicated region
      $region65: #{tpu_custom_call.1} parent=5 // pred_check
        %p703 = pneg %p702
      $region66: #{tpu_custom_call.1} parent=5 // pred_check_branch
        %705 = sbr.rel (%p703) target = $region68
      $region67: #{tpu_custom_call.1} parent=5 // pred_region
        %s706 = ssub.s32 %s28, 2
        // Predicated region
        $region69: #{tpu_custom_call.1} parent=67 // pred_check
          %p707 = pneg %p133
        $region70: #{tpu_custom_call.1} parent=67 // pred_check_branch
          %709 = sbr.rel (%p707) target = $region72
        $region71: #{tpu_custom_call.1} parent=67 // pred_region
          %s710 = sand.u32 %s118, 1
          %s711 = scalar_lea.sflag [#allocation7], %s710
          %s712 = sand.u32 %s118, 1
          %s713 = smul.addr %s712, 2
          %s714 = scalar_lea.vmem [#allocation10], %s713
          %715 = dma.done %s711, 32
        $region72: #{tpu_custom_call.1} parent=67 // pred_fallthru
          _
        // Predicated region
        $region73: #{tpu_custom_call.1} parent=67 // pred_check
          %p716 = pneg %p163
        $region74: #{tpu_custom_call.1} parent=67 // pred_check_branch
          %718 = sbr.rel (%p716) target = $region76
        $region75: #{tpu_custom_call.1} parent=67 // pred_region
          %s719 = sand.u32 %s34, 1
          %s720 = scalar_lea.sflag [#allocation12], %s719
          %s721 = sand.u32 %s148, 1
          %s722 = smul.addr %s721, 2
          %s723 = scalar_lea.vmem [#allocation11], %s722
          %724 = dma.done %s720, 32
        $region76: #{tpu_custom_call.1} parent=67 // pred_fallthru
          _
        // Predicated region
        $region77: #{tpu_custom_call.1} parent=67 // pred_check
          %p725 = pneg %p189
        $region78: #{tpu_custom_call.1} parent=67 // pred_check_branch
          %727 = sbr.rel (%p725) target = $region80
        $region79: #{tpu_custom_call.1} parent=67 // pred_region
          %s728 = sand.u32 %s34, 1
          %s729 = scalar_lea.sflag [#allocation12], %s728
          %s730 = sand.u32 %s174, 1
          %s731 = smul.addr %s730, 2
          %s732 = scalar_lea.vmem [#allocation13], %s731
          %733 = dma.done %s729, 32
        $region80: #{tpu_custom_call.1} parent=67 // pred_fallthru
          _
        // Predicated region
        $region81: #{tpu_custom_call.1} parent=67 // pred_check
          %p734 = pneg %p215
        $region82: #{tpu_custom_call.1} parent=67 // pred_check_branch
          %736 = sbr.rel (%p734) target = $region84
        $region83: #{tpu_custom_call.1} parent=67 // pred_region
          %s737 = sand.u32 %s34, 1
          %s738 = scalar_lea.sflag [#allocation15], %s737
          %s739 = sand.u32 %s200, 1
          %s740 = smul.addr %s739, 2
          %s741 = scalar_lea.vmem [#allocation14], %s740
          %742 = dma.done %s738, 32
        $region84: #{tpu_custom_call.1} parent=67 // pred_fallthru
          _
        // Predicated region
        $region85: #{tpu_custom_call.1} parent=67 // pred_check
          %p743 = pneg %p241
        $region86: #{tpu_custom_call.1} parent=67 // pred_check_branch
          %745 = sbr.rel (%p743) target = $region88
        $region87: #{tpu_custom_call.1} parent=67 // pred_region
          %s746 = sand.u32 %s34, 1
          %s747 = scalar_lea.sflag [#allocation15], %s746
          %s748 = sand.u32 %s226, 1
          %s749 = smul.addr %s748, 2
          %s750 = scalar_lea.vmem [#allocation16], %s749
          %751 = dma.done %s747, 32
        $region88: #{tpu_custom_call.1} parent=67 // pred_fallthru
          _
      $region68: #{tpu_custom_call.1} parent=5 // pred_fallthru
        _
    $region6: #{tpu_custom_call.1} parent=1 // loop_footer
      %s32 = sadd.s32 1, %s28
    $region7: #{tpu_custom_call.1} parent=1 // loop_footer_branch
      %27 = sbr.rel target = $region3
    $region8: #{tpu_custom_call.1} parent=1 // loop_exit
      _
    %752 = vsyncpa [#allocation6], 1
    %s753 = scalar_lea.sflag [#allocation6], 1
    %754 = vsyncpa %s753, 1
    %755 = vsyncpa [#allocation9], 1
    %s756 = scalar_lea.sflag [#allocation9], 1
    %757 = vsyncpa %s756, 1
    %758 = vsyncpa [#allocation7], 1
    %s759 = scalar_lea.sflag [#allocation7], 1
    %760 = vsyncpa %s759, 1
    %761 = vsyncpa [#allocation12], 1
    %s762 = scalar_lea.sflag [#allocation12], 1
    %763 = vsyncpa %s762, 1
    %764 = vsyncpa [#allocation15], 1
    %s765 = scalar_lea.sflag [#allocation15], 1
    %766 = vsyncpa %s765, 1

</llo_original>
